<compile_context>
chip_gen: v5e
topology: v5e:2x2
jax: 0.10.0
libtpu: 0.0.40
codegen_flags: <defaults>
</compile_context>

<pallas_src>
import jax
import jax.numpy as jnp
from jax.experimental import pallas as pl
from jax.experimental.pallas import tpu as pltpu


# ----------------------------- kernel ---------------------------------------


def _gelu_exact(x):
    """Exact (erf-based) GELU, matching torch.nn.GELU() default.

    erf via Abramowitz & Stegun 7.1.26 (max abs error ~1.5e-7).  The divide is
    done as an EUP approximate reciprocal + one Newton step so the VALU slot
    stays light; everything else is exp / abs / where / mul-add.
    """
    inv_sqrt2 = 0.7071067811865476
    z = x * inv_sqrt2
    az = jnp.abs(z)
    den = 1.0 + 0.3275911 * az
    t = pl.reciprocal(den, approx=True)     # EUP vrcp (separate issue slot)
    t = t * (2.0 - den * t)                 # one Newton step -> ~f32 accuracy
    poly = t * (
        0.254829592
        + t * (-0.284496736 + t * (1.421413741 + t * (-1.453152027 + t * 1.061405429)))
    )
    erf_abs = 1.0 - poly * jnp.exp(-az * az)
    erf_z = jnp.where(z >= 0, erf_abs, -erf_abs)
    return 0.5 * x * (1.0 + erf_z)


def ff_kernel(x_ref, w1_ref, b1_ref, w2_ref, b2_ref, o_ref):
    # x_ref : (d_model, TL)      input dtype (f32) -- batch dim squeezed
    # w1_ref: (d_inner, d_model) compute dtype (VMEM-resident)
    # b1_ref: (d_inner, 1)       f32
    # w2_ref: (d_model, d_inner) compute dtype (VMEM-resident)
    # b2_ref: (d_model, 1)       f32
    # o_ref : (d_model, TL)      output dtype
    xb = x_ref[...].astype(w1_ref.dtype)  # in-kernel cast (no extra HBM pass)

    # Pointwise conv 1 (MXU), f32 accumulation.
    h = jnp.dot(w1_ref[...], xb, preferred_element_type=jnp.float32)  # (d_inner, TL)
    h = h + b1_ref[...]

    # Exact GELU in f32 (exp + recip go to the EUP slot).
    h = _gelu_exact(h)

    # Pointwise conv 2 (MXU), f32 accumulation.
    y = jnp.dot(
        w2_ref[...], h.astype(w2_ref.dtype), preferred_element_type=jnp.float32
    )  # (d_model, TL)
    y = y + b2_ref[...]

    o_ref[...] = y.astype(o_ref.dtype)


# ----------------------------- wrapper ---------------------------------------


def _weight_norm(v, g):
    """W[o, :] = g[o] * v[o, :] / ||v[o, :]|| (norm over all dims but 0)."""
    cout = v.shape[0]
    v2 = v.reshape(cout, -1).astype(jnp.float32)
    norm = jnp.sqrt(jnp.sum(v2 * v2, axis=1, keepdims=True))
    return g.reshape(-1, 1).astype(jnp.float32) * v2 / norm  # (Cout, Cin)


def _select_tile_and_vmem(L_pad, B, d_model, d_inner, in_bytes, out_bytes,
                          compute_bytes):
    """Pick the largest lane-dense (multiple-of-128) L tile that divides the
    padded L and fits a per-generation VMEM budget, while keeping >= 2 grid
    programs when possible (v7x has 2 TensorCores).  Returns (TL, vmem_limit)."""
    try:
        vmem_cap = pltpu.get_tpu_info().vmem_capacity_bytes
    except Exception:  # be robust if the query is unavailable
        vmem_cap = 64 * 1024 * 1024  # conservative: v7x physical VMEM
    # ~21 MiB on v7x (64 MiB physical), 32 MiB on v5e/v6e (128 MiB physical).
    budget = min(vmem_cap // 3, 32 * 1024 * 1024)

    # TL-independent residency: weights + biases (allocated double-buffered by
    # the pipeliner even though their index_map is constant).
    fixed = 2 * (2 * d_model * d_inner * compute_bytes) + 2 * 2 * (d_model + d_inner) * 4

    def working_set(tl):
        return (
            fixed
            + 2 * d_model * tl * in_bytes        # double-buffered x block (f32)
            + 2 * d_model * tl * out_bytes       # double-buffered out block
            + d_inner * tl * 4                   # h (f32)
            + d_inner * tl * compute_bytes       # h cast for 2nd matmul
            + d_model * tl * 4                   # y (f32)
        )

    n_tiles = L_pad // 128
    # All multiples of 128 that evenly divide L_pad, largest first.
    candidates = [128 * d for d in range(n_tiles, 0, -1) if n_tiles % d == 0]
    # Keep both v7x TensorCores busy whenever the problem allows it.
    need_programs = 2 if B * n_tiles >= 2 else 1

    chosen = None
    for cand in candidates:
        if working_set(cand) > budget:
            continue
        if B * (L_pad // cand) < need_programs:
            continue
        chosen = cand
        break
    if chosen is None:
        chosen = 128  # smallest lane-dense tile; vmem_limit below will cover it

    ws = working_set(chosen)
    vmem_limit = int(min(vmem_cap * 3 // 4, max(ws + (4 << 20), 32 << 20)))
    return chosen, vmem_limit


def ff_forward(x, v1, g1, bias1, v2, g2, bias2, *,
               compute_dtype=jnp.bfloat16, out_dtype=None):
    """FF forward.

    x:     (B, d_model, L)        PyTorch NCW layout (kept f32 in HBM)
    v1,g1,bias1: weight_norm params of Conv1d(d_model, d_inner, 1)
                 v1: (d_inner, d_model, 1), g1: (d_inner,), bias1: (d_inner,)
    v2,g2,bias2: weight_norm params of Conv1d(d_inner, d_model, 1)
                 v2: (d_model, d_inner, 1), g2: (d_model,), bias2: (d_model,)
    out_dtype: output dtype; defaults to x.dtype (set to bf16 to halve the
               output HBM stream if the consumer accepts it).
    returns: (B, d_model, L)
    """
    B, d_model, L = x.shape
    d_inner = v1.shape[0]
    assert v2.shape[0] == d_model and v1.shape[1] == d_model and v2.shape[1] == d_inner
    out_dtype = x.dtype if out_dtype is None else out_dtype

    # Weight-norm folded once (tiny, outside the kernel); compute-dtype weights,
    # f32 biases (added onto the f32 accumulator).
    w1 = _weight_norm(v1, g1).astype(compute_dtype)  # (d_inner, d_model)
    w2 = _weight_norm(v2, g2).astype(compute_dtype)  # (d_model, d_inner)
    b1 = bias1.reshape(d_inner, 1).astype(jnp.float32)
    b2 = bias2.reshape(d_model, 1).astype(jnp.float32)

    # Pad L to a multiple of 128 so every tile is lane-dense.  The op is
    # pointwise along L, so padded columns are independent and sliced off.
    L_pad = max(128, ((L + 127) // 128) * 128)
    xp = x if L_pad == L else jnp.pad(x, ((0, 0), (0, 0), (0, L_pad - L)))

    in_bytes = jnp.dtype(x.dtype).itemsize
    out_bytes = jnp.dtype(out_dtype).itemsize
    compute_bytes = jnp.dtype(compute_dtype).itemsize

    TL, vmem_limit = _select_tile_and_vmem(
        L_pad, B, d_model, d_inner, in_bytes, out_bytes, compute_bytes)
    assert L_pad % TL == 0
    n_l = L_pad // TL
    grid = (B, n_l)

    cost = pl.CostEstimate(
        flops=4 * B * L_pad * d_model * d_inner,        # two pointwise GEMMs
        transcendentals=2 * B * L_pad * d_inner,        # exp + recip per GELU elem
        bytes_accessed=(
            B * d_model * L_pad * in_bytes              # x (read once, f32)
            + B * d_model * L_pad * out_bytes           # y
            + 2 * d_model * d_inner * compute_bytes     # weights
            + (d_model + d_inner) * 4                   # biases
        ),
    )

    out = pl.pallas_call(
        ff_kernel,
        out_shape=jax.ShapeDtypeStruct((B, d_model, L_pad), out_dtype),
        grid=grid,
        in_specs=[
            pl.BlockSpec((None, d_model, TL), lambda b, l: (b, 0, l)),  # x, batch squeezed
            pl.BlockSpec((d_inner, d_model), lambda b, l: (0, 0)),      # resident weight
            pl.BlockSpec((d_inner, 1), lambda b, l: (0, 0)),
            pl.BlockSpec((d_model, d_inner), lambda b, l: (0, 0)),      # resident weight
            pl.BlockSpec((d_model, 1), lambda b, l: (0, 0)),
        ],
        out_specs=pl.BlockSpec((None, d_model, TL), lambda b, l: (b, 0, l)),
        compiler_params=pltpu.CompilerParams(
            dimension_semantics=("parallel", "parallel"),
            vmem_limit_bytes=vmem_limit,
        ),
        cost_estimate=cost,
    )(xp, w1, b1, w2, b2)

    if L_pad != L:
        out = out[:, :, :L]
    return out


# ----------------------------- reference --------------------------------------


def ff_reference(x, v1, g1, bias1, v2, g2, bias2):
    """Pure-JAX f32 reference mirroring the PyTorch forward (exact GELU)."""
    w1 = _weight_norm(v1, g1)  # (d_inner, d_model)
    w2 = _weight_norm(v2, g2)  # (d_model, d_inner)
    h = jnp.einsum("oc,bcl->bol", w1, x.astype(jnp.float32)) + bias1.reshape(1, -1, 1)
    h = 0.5 * h * (1.0 + jax.scipy.special.erf(h / jnp.sqrt(2.0)))
    y = jnp.einsum("oc,bcl->bol", w2, h) + bias2.reshape(1, -1, 1)
    return y


# ----------------------------- test --------------------------------------------


if __name__ == "__main__":
    # Shapes consistent with FF(d_model=8, expand=2) on a (B, d_model, L) input.
    B = 2
    d_model = 8
    expand = 2
    d_inner = expand * d_model
    L = 384  # multiple of 128 -> no padding; TL = 384, grid = (2, 1)

    key = jax.random.PRNGKey(0)
    kx, kv1, kg1, kb1, kv2, kg2, kb2 = jax.random.split(key, 7)

    x = jax.random.normal(kx, (B, d_model, L), dtype=jnp.float32)

    # Synthetic weight_norm Conv1d params (kernel_size = 1).
    std1 = (2.0 / d_model) ** 0.5
    v1 = std1 * jax.random.normal(kv1, (d_inner, d_model, 1), dtype=jnp.float32)
    g1 = 1.0 + 0.1 * jax.random.normal(kg1, (d_inner,), dtype=jnp.float32)
    bnd1 = 1.0 / (d_model**0.5)
    bias1 = jax.random.uniform(kb1, (d_inner,), jnp.float32, -bnd1, bnd1)

    std2 = (2.0 / d_inner) ** 0.5
    v2 = std2 * jax.random.normal(kv2, (d_model, d_inner, 1), dtype=jnp.float32)
    g2 = 1.0 + 0.1 * jax.random.normal(kg2, (d_model,), dtype=jnp.float32)
    bnd2 = 1.0 / (d_inner**0.5)
    bias2 = jax.random.uniform(kb2, (d_model,), jnp.float32, -bnd2, bnd2)

    # Main (optimized) path: bf16 weights / in-kernel bf16 cast, f32 accumulation.
    ref = ff_reference(x, v1, g1, bias1, v2, g2, bias2)
    out_bf16 = ff_forward(x, v1, g1, bias1, v2, g2, bias2, compute_dtype=jnp.bfloat16)
    out_bf16 = jax.block_until_ready(out_bf16)
    assert out_bf16.shape == (B, d_model, L), out_bf16.shape
    assert out_bf16.dtype == x.dtype, out_bf16.dtype
    assert jnp.allclose(out_bf16, ref, atol=7e-2, rtol=5e-2), "bf16 path mismatch"

    # Ragged-L + full-precision path: exercises the wrapper padding and gives a
    # tight correctness check of the same kernel in f32.
    L2 = 200
    x2 = jax.random.normal(jax.random.PRNGKey(1), (B, d_model, L2), dtype=jnp.float32)
    ref2 = ff_reference(x2, v1, g1, bias1, v2, g2, bias2)
    out_f32 = ff_forward(x2, v1, g1, bias1, v2, g2, bias2, compute_dtype=jnp.float32)
    out_f32 = jax.block_until_ready(out_f32)
    assert out_f32.shape == (B, d_model, L2), out_f32.shape
    assert jnp.allclose(out_f32, ref2, atol=1e-4, rtol=1e-4), "f32 (ragged) mismatch"

    print("KERNEL_OK")
</pallas_src>

<mosaic_0001>
module attributes {stable_mosaic.version = 11 : i64} {
  func.func @ff_kernel(%arg0: i32, %arg1: i32, %arg2: memref<1x8x384xf32, #tpu.memory_space<vmem>>, %arg3: memref<16x8xbf16, #tpu.memory_space<vmem>>, %arg4: memref<16x1xf32, #tpu.memory_space<vmem>>, %arg5: memref<8x16xbf16, #tpu.memory_space<vmem>>, %arg6: memref<8x1xf32, #tpu.memory_space<vmem>>, %arg7: memref<1x8x384xf32, #tpu.memory_space<vmem>>) attributes {dimension_semantics = [#tpu.dimension_semantics<parallel>, #tpu.dimension_semantics<parallel>], iteration_bounds = array<i64: 2, 1>, scalar_prefetch = 0 : i64, scratch_operands = 0 : i64, tpu.core_type = #tpu.core_type<tc>, window_params = [{transform_indices = @transform_0, window_bounds = array<i64: 1, 8, 384>}, {pipeline_mode = #tpu.pipeline_mode<synchronous>, transform_indices = @transform_1, window_bounds = array<i64: 16, 8>}, {pipeline_mode = #tpu.pipeline_mode<synchronous>, transform_indices = @transform_2, window_bounds = array<i64: 16, 1>}, {pipeline_mode = #tpu.pipeline_mode<synchronous>, transform_indices = @transform_3, window_bounds = array<i64: 8, 16>}, {pipeline_mode = #tpu.pipeline_mode<synchronous>, transform_indices = @transform_4, window_bounds = array<i64: 8, 1>}, {transform_indices = @transform_5, window_bounds = array<i64: 1, 8, 384>}]} {
    %c0 = arith.constant 0 : index
    %c0_0 = arith.constant 0 : index
    %c0_1 = arith.constant 0 : index
    %0 = vector.load %arg2[%c0, %c0_0, %c0_1] : memref<1x8x384xf32, #tpu.memory_space<vmem>>, vector<1x8x384xf32>
    %1 = vector.shape_cast %0 : vector<1x8x384xf32> to vector<8x384xf32>
    %2 = arith.truncf %1 : vector<8x384xf32> to vector<8x384xbf16>
    %c0_2 = arith.constant 0 : index
    %c0_3 = arith.constant 0 : index
    %3 = vector.load %arg3[%c0_2, %c0_3] : memref<16x8xbf16, #tpu.memory_space<vmem>>, vector<16x8xbf16>
    %cst = arith.constant dense<0.000000e+00> : vector<16x384xf32>
    %4 = tpu.matmul %3, %2, %cst {dimension_numbers = #tpu.dot_dimension_numbers<[1], [0], [0], [1], [0, 0, 1, 1], [], []>} : vector<16x8xbf16>, vector<8x384xbf16>, vector<16x384xf32> -> vector<16x384xf32>
    %c0_4 = arith.constant 0 : index
    %c0_5 = arith.constant 0 : index
    %5 = vector.load %arg4[%c0_4, %c0_5] : memref<16x1xf32, #tpu.memory_space<vmem>>, vector<16x1xf32>
    %6 = vector.broadcast %5 : vector<16x1xf32> to vector<16x384xf32>
    %7 = arith.addf %4, %6 : vector<16x384xf32>
    %cst_6 = arith.constant 0.707106769 : f32
    %8 = vector.broadcast %cst_6 : f32 to vector<16x384xf32>
    %9 = arith.mulf %7, %8 : vector<16x384xf32>
    %10 = math.absf %9 : vector<16x384xf32>
    %cst_7 = arith.constant 0.327591091 : f32
    %11 = vector.broadcast %cst_7 : f32 to vector<16x384xf32>
    %12 = arith.mulf %11, %10 : vector<16x384xf32>
    %cst_8 = arith.constant 1.000000e+00 : f32
    %13 = vector.broadcast %cst_8 : f32 to vector<16x384xf32>
    %14 = arith.addf %13, %12 : vector<16x384xf32>
    %15 = tpu.reciprocal %14 {approx = true} : vector<16x384xf32> -> vector<16x384xf32>
    %16 = arith.mulf %14, %15 : vector<16x384xf32>
    %cst_9 = arith.constant 2.000000e+00 : f32
    %17 = vector.broadcast %cst_9 : f32 to vector<16x384xf32>
    %18 = arith.subf %17, %16 : vector<16x384xf32>
    %19 = arith.mulf %15, %18 : vector<16x384xf32>
    %cst_10 = arith.constant 1.06140542 : f32
    %20 = vector.broadcast %cst_10 : f32 to vector<16x384xf32>
    %21 = arith.mulf %19, %20 : vector<16x384xf32>
    %cst_11 = arith.constant -1.45315206 : f32
    %22 = vector.broadcast %cst_11 : f32 to vector<16x384xf32>
    %23 = arith.addf %22, %21 : vector<16x384xf32>
    %24 = arith.mulf %19, %23 : vector<16x384xf32>
    %cst_12 = arith.constant 1.42141378 : f32
    %25 = vector.broadcast %cst_12 : f32 to vector<16x384xf32>
    %26 = arith.addf %25, %24 : vector<16x384xf32>
    %27 = arith.mulf %19, %26 : vector<16x384xf32>
    %cst_13 = arith.constant -0.284496725 : f32
    %28 = vector.broadcast %cst_13 : f32 to vector<16x384xf32>
    %29 = arith.addf %28, %27 : vector<16x384xf32>
    %30 = arith.mulf %19, %29 : vector<16x384xf32>
    %cst_14 = arith.constant 0.254829586 : f32
    %31 = vector.broadcast %cst_14 : f32 to vector<16x384xf32>
    %32 = arith.addf %31, %30 : vector<16x384xf32>
    %33 = arith.mulf %19, %32 : vector<16x384xf32>
    %cst_15 = arith.constant 0.000000e+00 : f32
    %34 = vector.broadcast %cst_15 : f32 to vector<16x384xf32>
    %35 = arith.subf %34, %10 : vector<16x384xf32>
    %36 = arith.mulf %35, %10 : vector<16x384xf32>
    %37 = math.exp %36 : vector<16x384xf32>
    %38 = arith.mulf %33, %37 : vector<16x384xf32>
    %cst_16 = arith.constant 1.000000e+00 : f32
    %39 = vector.broadcast %cst_16 : f32 to vector<16x384xf32>
    %40 = arith.subf %39, %38 : vector<16x384xf32>
    %cst_17 = arith.constant 0.000000e+00 : f32
    %41 = vector.broadcast %cst_17 : f32 to vector<16x384xf32>
    %42 = arith.cmpf oge, %9, %41 : vector<16x384xf32>
    %cst_18 = arith.constant 0.000000e+00 : f32
    %43 = vector.broadcast %cst_18 : f32 to vector<16x384xf32>
    %44 = arith.subf %43, %40 : vector<16x384xf32>
    %45 = arith.select %42, %40, %44 : vector<16x384xi1>, vector<16x384xf32>
    %cst_19 = arith.constant 5.000000e-01 : f32
    %46 = vector.broadcast %cst_19 : f32 to vector<16x384xf32>
    %47 = arith.mulf %46, %7 : vector<16x384xf32>
    %cst_20 = arith.constant 1.000000e+00 : f32
    %48 = vector.broadcast %cst_20 : f32 to vector<16x384xf32>
    %49 = arith.addf %48, %45 : vector<16x384xf32>
    %50 = arith.mulf %47, %49 : vector<16x384xf32>
    %c0_21 = arith.constant 0 : index
    %c0_22 = arith.constant 0 : index
    %51 = vector.load %arg5[%c0_21, %c0_22] : memref<8x16xbf16, #tpu.memory_space<vmem>>, vector<8x16xbf16>
    %52 = arith.truncf %50 : vector<16x384xf32> to vector<16x384xbf16>
    %cst_23 = arith.constant dense<0.000000e+00> : vector<8x384xf32>
    %53 = tpu.matmul %51, %52, %cst_23 {dimension_numbers = #tpu.dot_dimension_numbers<[1], [0], [0], [1], [0, 0, 1, 1], [], []>} : vector<8x16xbf16>, vector<16x384xbf16>, vector<8x384xf32> -> vector<8x384xf32>
    %c0_24 = arith.constant 0 : index
    %c0_25 = arith.constant 0 : index
    %54 = vector.load %arg6[%c0_24, %c0_25] : memref<8x1xf32, #tpu.memory_space<vmem>>, vector<8x1xf32>
    %55 = vector.broadcast %54 : vector<8x1xf32> to vector<8x384xf32>
    %56 = arith.addf %53, %55 : vector<8x384xf32>
    %c0_26 = arith.constant 0 : index
    %c0_27 = arith.constant 0 : index
    %c0_28 = arith.constant 0 : index
    %57 = vector.load %arg7[%c0_26, %c0_27, %c0_28] : memref<1x8x384xf32, #tpu.memory_space<vmem>>, vector<1x8x384xf32>
    %58 = vector.shape_cast %57 : vector<1x8x384xf32> to vector<8x384xf32>
    %59 = vector.shape_cast %56 : vector<8x384xf32> to vector<1x8x384xf32>
    tpu.vector_store %arg7[%c0_26, %c0_27, %c0_28], %59 {strides = array<i32>} : memref<1x8x384xf32, #tpu.memory_space<vmem>>, vector<1x8x384xf32>,
    return
  }
  func.func @transform_0(%arg0: i32, %arg1: i32) -> (i32, i32, i32) {
    %c0_i32 = arith.constant 0 : i32
    %c0_i32_0 = arith.constant 0 : i32
    return %arg0, %c0_i32, %arg1 : i32, i32, i32
  }
  func.func @transform_1(%arg0: i32, %arg1: i32) -> (i32, i32) {
    %c0_i32 = arith.constant 0 : i32
    %c0_i32_0 = arith.constant 0 : i32
    %c0_i32_1 = arith.constant 0 : i32
    return %c0_i32, %c0_i32_0 : i32, i32
  }
  func.func @transform_2(%arg0: i32, %arg1: i32) -> (i32, i32) {
    %c0_i32 = arith.constant 0 : i32
    %c0_i32_0 = arith.constant 0 : i32
    %c0_i32_1 = arith.constant 0 : i32
    return %c0_i32, %c0_i32_0 : i32, i32
  }
  func.func @transform_3(%arg0: i32, %arg1: i32) -> (i32, i32) {
    %c0_i32 = arith.constant 0 : i32
    %c0_i32_0 = arith.constant 0 : i32
    %c0_i32_1 = arith.constant 0 : i32
    return %c0_i32, %c0_i32_0 : i32, i32
  }
  func.func @transform_4(%arg0: i32, %arg1: i32) -> (i32, i32) {
    %c0_i32 = arith.constant 0 : i32
    %c0_i32_0 = arith.constant 0 : i32
    %c0_i32_1 = arith.constant 0 : i32
    return %c0_i32, %c0_i32_0 : i32, i32
  }
  func.func @transform_5(%arg0: i32, %arg1: i32) -> (i32, i32, i32) {
    %c0_i32 = arith.constant 0 : i32
    %c0_i32_0 = arith.constant 0 : i32
    return %arg0, %c0_i32, %arg1 : i32, i32, i32
  }
}

</mosaic_0001>

<llo_original>
// kernel: tpu_custom_call.1
$region0: #{tpu_custom_call.1}
  #allocation0 [shape = 'u32[]', space=smem, size = 0x4, offset = 0x4, fixed_abs, tag = 'smem constant byte address 0x4 - core index']
  #allocation1 [shape = 'u32[72,128]{1,0:T(1,128)}', space=vmem, size = 0x9000, scoped, tag = 'internal scratch']
  %s0 = inlined_call_operand.hbm [shape: f32[2,8,384], index: 0, kind: input, shape index: {}]
  %s1 = inlined_call_operand.vmem [shape: bf16[16,8], index: 1, kind: input, shape index: {}]
  %s2 = inlined_call_operand.vmem [shape: f32[16,1], index: 2, kind: input, shape index: {}]
  %s3 = inlined_call_operand.vmem [shape: bf16[8,16], index: 3, kind: input, shape index: {}]
  %s4 = inlined_call_operand.vmem [shape: f32[8,1], index: 4, kind: input, shape index: {}]
  %s5 = inlined_call_operand.hbm [shape: f32[2,8,384], index: 5, kind: output, shape index: {}]
  %s6 = sld [smem:[#allocation0]]
  $region57: #{tpu_custom_call.1} parent=0
    _
  %s8 = ssub.s32 1, %s6
  %s9 = scalar_select 0, %s8, %s6
  $region1: #{tpu_custom_call.1} parent=0
    #allocation2 [shape = 'u8[24576]{0}', space=vmem, size = 0x6000, scoped, tag = 'input window, operand 0']
    #allocation3 [shape = 's32[2]{0}', space=sflag, size = 0x8, scoped, tag = 'scoped memory for tpu_custom_call.1']
    #allocation4 [shape = 's32[2]{0}', space=sflag, size = 0x8, scoped, tag = 'scoped memory for tpu_custom_call.1']
    #allocation5 [shape = 'u8[24576]{0}', space=vmem, size = 0x6000, scoped, tag = 'output window, operand 0']
    %10 = vsyncpa [#allocation3], 0
    %s11 = scalar_lea.sflag [#allocation3], 1
    %12 = vsyncpa %s11, 0
    %13 = vsyncpa [#allocation4], 0
    %s14 = scalar_lea.sflag [#allocation4], 1
    %15 = vsyncpa %s14, 0
    loop: start=0, step=1, limit=4
    $region2: #{tpu_custom_call.1} parent=1 // loop_pre_header
      _
    $region3: #{tpu_custom_call.1} parent=1 // loop_header
      %s17 = sphi 0, %s21
      %p18 = scmp.ge.s32.totalorder %s17, 4
      %s24 = sphi 0, %s36
      %s25 = sphi 0, %s32
      %s26 = sphi 0, %s24
      %s27 = sphi 0, %s25
      %s28 = sphi 0, %s26
      %s29 = sphi 0, %s27
      %s41 = sphi 0, %s43
      %s44 = sphi 0, %s41
      %s45 = sphi 0, %s44
      %s61 = sphi 0, %s45
      %s65 = sphi 0, %s65
      %s67 = sphi 0, %s65
      %s68 = sphi 0, %s67
      %s82 = sphi 0, %s68
      %s86 = sphi 0, %s86
      %s88 = sphi 0, %s86
      %s89 = sphi 0, %s88
      %s103 = sphi 0, %s89
      %s107 = sphi 0, %s107
      %s109 = sphi 0, %s107
      %s110 = sphi 0, %s109
      %s124 = sphi 0, %s110
      %s128 = sphi 0, %s128
      %s130 = sphi 0, %s128
      %s131 = sphi 0, %s130
      %s145 = sphi 0, %s131
      %s153 = sphi 0, %s155
      %s156 = sphi 0, %s153
      %s157 = sphi 0, %s156
      %s173 = sphi 0, %s157
    $region4: #{tpu_custom_call.1} parent=1 // loop_header_branch
      %20 = sbr.rel (%p18) target = $region8
    $region5: #{tpu_custom_call.1} parent=1 // loop_body
      %s22 = ssub.s32 %s17, 1
      %s23 = ssub.s32 %s17, 2
      %s30 = sadd.s32 1, %s25
      %p31 = scmp.ge.s32.totalorder %s30, 1
      %s32 = scalar_select %p31, 0, %s30
      %s33 = sadd.s32 1, %s24
      %s34 = scalar_select %p31, %s33, %s24
      %p35 = scmp.ge.s32.totalorder %s34, 2
      %s36 = scalar_select %p35, 0, %s34
      %s37 = ssub.s32 %s24, %s36
      %s38 = ssub.s32 %s25, %s32
      %s39 = sor.u32 %s37, %s38
      %p40 = scmp.eq.s32.totalorder %s39, 0
      %s42 = sadd.s32 %s41, 1
      %s43 = scalar_select %p40, %s41, %s42
      %p46 = pneg %p40
      %p47 = scmp.eq.s32.totalorder %s17, 1
      %p48 = por %p46, %p47
      %p49 = scmp.ne.s32.totalorder %s41, %s44
      %p50 = scmp.eq.s32.totalorder %s17, 0
      %p51 = por %p49, %p50
      %p52 = scmp.ne.s32.totalorder %s41, %s44
      %p53 = scmp.eq.s32.totalorder %s22, 1
      %p54 = por %p52, %p53
      %p55 = scmp.ne.s32.totalorder %s44, %s45
      %p56 = scmp.eq.s32.totalorder %s22, 0
      %p57 = por %p55, %p56
      %p58 = scmp.ne.s32.totalorder %s44, %s45
      %p59 = scmp.eq.s32.totalorder %s23, 1
      %p60 = por %p58, %p59
      %p62 = scmp.ne.s32.totalorder %s45, %s61
      %p63 = scmp.eq.s32.totalorder %s23, 0
      %p64 = por %p62, %p63
      %s66 = sadd.s32 %s65, 1
      %p69 = scmp.eq.s32.totalorder %s17, 1
      %p70 = scmp.ne.s32.totalorder %s65, %s67
      %p71 = scmp.eq.s32.totalorder %s17, 0
      %p72 = por %p70, %p71
      %p73 = scmp.ne.s32.totalorder %s65, %s67
      %p74 = scmp.eq.s32.totalorder %s22, 1
      %p75 = por %p73, %p74
      %p76 = scmp.ne.s32.totalorder %s67, %s68
      %p77 = scmp.eq.s32.totalorder %s22, 0
      %p78 = por %p76, %p77
      %p79 = scmp.ne.s32.totalorder %s67, %s68
      %p80 = scmp.eq.s32.totalorder %s23, 1
      %p81 = por %p79, %p80
      %p83 = scmp.ne.s32.totalorder %s68, %s82
      %p84 = scmp.eq.s32.totalorder %s23, 0
      %p85 = por %p83, %p84
      %s87 = sadd.s32 %s86, 1
      %p90 = scmp.eq.s32.totalorder %s17, 1
      %p91 = scmp.ne.s32.totalorder %s86, %s88
      %p92 = scmp.eq.s32.totalorder %s17, 0
      %p93 = por %p91, %p92
      %p94 = scmp.ne.s32.totalorder %s86, %s88
      %p95 = scmp.eq.s32.totalorder %s22, 1
      %p96 = por %p94, %p95
      %p97 = scmp.ne.s32.totalorder %s88, %s89
      %p98 = scmp.eq.s32.totalorder %s22, 0
      %p99 = por %p97, %p98
      %p100 = scmp.ne.s32.totalorder %s88, %s89
      %p101 = scmp.eq.s32.totalorder %s23, 1
      %p102 = por %p100, %p101
      %p104 = scmp.ne.s32.totalorder %s89, %s103
      %p105 = scmp.eq.s32.totalorder %s23, 0
      %p106 = por %p104, %p105
      %s108 = sadd.s32 %s107, 1
      %p111 = scmp.eq.s32.totalorder %s17, 1
      %p112 = scmp.ne.s32.totalorder %s107, %s109
      %p113 = scmp.eq.s32.totalorder %s17, 0
      %p114 = por %p112, %p113
      %p115 = scmp.ne.s32.totalorder %s107, %s109
      %p116 = scmp.eq.s32.totalorder %s22, 1
      %p117 = por %p115, %p116
      %p118 = scmp.ne.s32.totalorder %s109, %s110
      %p119 = scmp.eq.s32.totalorder %s22, 0
      %p120 = por %p118, %p119
      %p121 = scmp.ne.s32.totalorder %s109, %s110
      %p122 = scmp.eq.s32.totalorder %s23, 1
      %p123 = por %p121, %p122
      %p125 = scmp.ne.s32.totalorder %s110, %s124
      %p126 = scmp.eq.s32.totalorder %s23, 0
      %p127 = por %p125, %p126
      %s129 = sadd.s32 %s128, 1
      %p132 = scmp.eq.s32.totalorder %s17, 1
      %p133 = scmp.ne.s32.totalorder %s128, %s130
      %p134 = scmp.eq.s32.totalorder %s17, 0
      %p135 = por %p133, %p134
      %p136 = scmp.ne.s32.totalorder %s128, %s130
      %p137 = scmp.eq.s32.totalorder %s22, 1
      %p138 = por %p136, %p137
      %p139 = scmp.ne.s32.totalorder %s130, %s131
      %p140 = scmp.eq.s32.totalorder %s22, 0
      %p141 = por %p139, %p140
      %p142 = scmp.ne.s32.totalorder %s130, %s131
      %p143 = scmp.eq.s32.totalorder %s23, 1
      %p144 = por %p142, %p143
      %p146 = scmp.ne.s32.totalorder %s131, %s145
      %p147 = scmp.eq.s32.totalorder %s23, 0
      %p148 = por %p146, %p147
      %s149 = ssub.s32 %s24, %s36
      %s150 = ssub.s32 %s25, %s32
      %s151 = sor.u32 %s149, %s150
      %p152 = scmp.eq.s32.totalorder %s151, 0
      %s154 = sadd.s32 %s153, 1
      %s155 = scalar_select %p152, %s153, %s154
      %p158 = pneg %p152
      %p159 = scmp.eq.s32.totalorder %s17, 1
      %p160 = por %p158, %p159
      %p161 = scmp.ne.s32.totalorder %s153, %s156
      %p162 = scmp.eq.s32.totalorder %s17, 0
      %p163 = por %p161, %p162
      %p164 = scmp.ne.s32.totalorder %s153, %s156
      %p165 = scmp.eq.s32.totalorder %s22, 1
      %p166 = por %p164, %p165
      %p167 = scmp.ne.s32.totalorder %s156, %s157
      %p168 = scmp.eq.s32.totalorder %s22, 0
      %p169 = por %p167, %p168
      %p170 = scmp.ne.s32.totalorder %s156, %s157
      %p171 = scmp.eq.s32.totalorder %s23, 1
      %p172 = por %p170, %p171
      %p174 = scmp.ne.s32.totalorder %s157, %s173
      %p175 = scmp.eq.s32.totalorder %s23, 0
      %p176 = por %p174, %p175
      %p177 = scmp.le.s32.totalorder 1, %s17
      %p178 = scmp.lt.s32.totalorder %s17, 3
      %p179 = pnand %p177, %p178
      %p180 = pneg %p179
      // Predicated region
      $region9: #{tpu_custom_call.1} parent=5 // pred_check
        _
      $region10: #{tpu_custom_call.1} parent=5 // pred_check_branch
        %182 = sbr.rel (%p179) target = $region12
      $region11: #{tpu_custom_call.1} parent=5 // pred_region
        %s183 = ssub.s32 %s17, 1
        // Predicated region
        $region13: #{tpu_custom_call.1} parent=11 // pred_check
          %p184 = pneg %p78
        $region14: #{tpu_custom_call.1} parent=11 // pred_check_branch
          %186 = sbr.rel (%p184) target = $region16
        $region15: #{tpu_custom_call.1} parent=11 // pred_region
          _
        $region16: #{tpu_custom_call.1} parent=11 // pred_fallthru
          _
        // Predicated region
        $region17: #{tpu_custom_call.1} parent=11 // pred_check
          %p187 = pneg %p99
        $region18: #{tpu_custom_call.1} parent=11 // pred_check_branch
          %189 = sbr.rel (%p187) target = $region20
        $region19: #{tpu_custom_call.1} parent=11 // pred_region
          _
        $region20: #{tpu_custom_call.1} parent=11 // pred_fallthru
          _
        // Predicated region
        $region21: #{tpu_custom_call.1} parent=11 // pred_check
          %p190 = pneg %p120
        $region22: #{tpu_custom_call.1} parent=11 // pred_check_branch
          %192 = sbr.rel (%p190) target = $region24
        $region23: #{tpu_custom_call.1} parent=11 // pred_region
          _
        $region24: #{tpu_custom_call.1} parent=11 // pred_fallthru
          _
        // Predicated region
        $region25: #{tpu_custom_call.1} parent=11 // pred_check
          %p193 = pneg %p141
        $region26: #{tpu_custom_call.1} parent=11 // pred_check_branch
          %195 = sbr.rel (%p193) target = $region28
        $region27: #{tpu_custom_call.1} parent=11 // pred_region
          _
        $region28: #{tpu_custom_call.1} parent=11 // pred_fallthru
          _
      $region12: #{tpu_custom_call.1} parent=5 // pred_fallthru
        _
      %p196 = scmp.lt.s32.totalorder %s17, 2
      // Predicated region
      $region29: #{tpu_custom_call.1} parent=5 // pred_check
        %p197 = pneg %p196
      $region30: #{tpu_custom_call.1} parent=5 // pred_check_branch
        %199 = sbr.rel (%p197) target = $region32
      $region31: #{tpu_custom_call.1} parent=5 // pred_region
        // Predicated region
        $region33: #{tpu_custom_call.1} parent=31 // pred_check
          %p200 = pneg %p51
        $region34: #{tpu_custom_call.1} parent=31 // pred_check_branch
          %202 = sbr.rel (%p200) target = $region36
        $region35: #{tpu_custom_call.1} parent=31 // pred_region
          %s203 = sand.u32 %s41, 1
          %s204 = scalar_lea.sflag [#allocation3], %s203
          %s205 = sand.u32 %s41, 1
          %s206 = smul.addr %s205, 24
          %s207 = scalar_lea.vmem [#allocation2], %s206
          %s208 = smul.u32 3, %s25
          %210 = vsyncadd %s204, 0
          %s211 = smul.addr %s24, 3
          %s212 = sadd.s32 %s208, %s211
          %s213 = smul.addr %s212, 8
          %s214 = scalar_lea.hbm %s0, %s213
          %s216 = sshll.u32 %s214, 4
          %s217 = int_to_ptr.hbm [resolvable:$true] %s216
          %s218 = sshll.u32 %s207, 4
          %s219 = int_to_ptr.vmem [resolvable:$true] %s218
          %221 = dma.hbm_to_vmem [thread:$0]  %s217, 384, %s219, %s204
        $region36: #{tpu_custom_call.1} parent=31 // pred_fallthru
          _
      $region32: #{tpu_custom_call.1} parent=5 // pred_fallthru
        _
      %p222 = scmp.le.s32.totalorder 1, %s17
      %p223 = scmp.lt.s32.totalorder %s17, 3
      %p224 = pnand %p222, %p223
      %p225 = pneg %p224
      // Predicated region
      $region37: #{tpu_custom_call.1} parent=5 // pred_check
        _
      $region38: #{tpu_custom_call.1} parent=5 // pred_check_branch
        %227 = sbr.rel (%p224) target = $region40
      $region39: #{tpu_custom_call.1} parent=5 // pred_region
        %s228 = ssub.s32 %s17, 1
        %s229 = sand.u32 %s44, 1
        %s230 = scalar_lea.sflag [#allocation3], %s229
        %s231 = sand.u32 %s44, 1
        %s232 = smul.addr %s231, 24
        %s233 = scalar_lea.vmem [#allocation2], %s232
        // Predicated region
        $region41: #{tpu_custom_call.1} parent=39 // pred_check
          %p234 = pneg %p57
        $region42: #{tpu_custom_call.1} parent=39 // pred_check_branch
          %236 = sbr.rel (%p234) target = $region44
        $region43: #{tpu_custom_call.1} parent=39 // pred_region
          %238 = dma.done %s230, 384
        $region44: #{tpu_custom_call.1} parent=39 // pred_fallthru
          _
        %s239 = sand.u32 %s44, 1
        %s240 = scalar_lea.sflag [#allocation3], %s239
        %s241 = sand.u32 %s44, 1
        %s242 = smul.addr %s241, 24
        %s243 = scalar_lea.vmem [#allocation2], %s242
        %p244 = pneg %p57
        %p245 = pneg %p54
        %p246 = pneg %p78
        %p247 = pneg %p75
        %p248 = pneg %p99
        %p249 = pneg %p96
        %p250 = pneg %p120
        %p251 = pneg %p117
        %p252 = pneg %p141
        %p253 = pneg %p138
        %p254 = pneg %p169
        %p255 = pneg %p166
        %s256 = sand.u32 %s156, 1
        %s257 = scalar_lea.sflag [#allocation4], %s256
        %s258 = sand.u32 %s156, 1
        %s259 = smul.addr %s258, 24
        %s260 = scalar_lea.vmem [#allocation5], %s259
        %s261 = smul.u32 3, %s27
        %s262 = smul.u32 3, %s27
        %v264 = vld [vmem:[%s233] sm:$0xff]
        %v265 = vld [vmem:[%s233 + $0x8] sm:$0xff]
        %v266 = vld [vmem:[%s233 + $0x10] sm:$0xff]
        %v267 = vpack.c.bf16 %v264, %v264
        %v268 = vpack.c.bf16 %v265, %v265
        %v269 = vpack.c.bf16 %v266, %v266
        %v270 = vld [vmem:[%s1] sm:$0xf]
        %v271 = vld [vmem:[%s1 + $0x4] sm:$0xf]
        %v272 = vld [vmem:[%s2] sm:$0xff]
        %v273 = vld [vmem:[%s2 + $0x8] sm:$0xff]
        %275 = vset.pattern.permute.xlu0 0
        %276 = vperm.xlu0 %275, %v272
        %v277 = vpop.permute.xlu0 %276
        %280 = vset.pattern.permute.xlu0 0
        %281 = vperm.xlu0 %280, %v273
        %v282 = vpop.permute.xlu0 %281
        %v286 = vunpack.c.l.b16 %v270
        %v287 = vunpack.c.l.b16 %v271
        %v288 = vpack.c.b16 %v287, %v286
        %vm289 = vcmask 64512
        %v291 = vsel %vm289, %v288, 0
        %vm293 = vcmask 1043456
        %v295 = vsel %vm293, %v267, 0
        %v298 = vsel %vm293, %v268, 0
        %v301 = vsel %vm293, %v269, 0
        %303 = vmatpush.bf16.msra.mxu0 0
        %304 = vmatpush.bf16.msra.mxu0 0
        %305 = vmatpush.bf16.msra.mxu0 0
        %306 = vmatpush.bf16.msra.mxu0 0
        %307 = vmatpush.bf16.msra.mxu0 0
        %308 = vmatpush.bf16.msra.mxu0 0
        %309 = vmatpush.bf16.msra.mxu0 0
        %310 = vmatpush.bf16.msra.mxu0 %v295
        %311 = vmatmul.bf16.gmra.mxu0 %v291
        %v312 = vpop.f32.mrf.mxu0
        %v313 = vadd.f32 %v277, %v312
        %v314 = vpop.f32.mrf.mxu0
        %v315 = vadd.f32 %v282, %v314
        %316 = vdwg.mxu0
        %317 = vmatpush.bf16.msra.mxu0 0
        %318 = vmatpush.bf16.msra.mxu0 0
        %319 = vmatpush.bf16.msra.mxu0 0
        %320 = vmatpush.bf16.msra.mxu0 0
        %321 = vmatpush.bf16.msra.mxu0 0
        %322 = vmatpush.bf16.msra.mxu0 0
        %323 = vmatpush.bf16.msra.mxu0 0
        %324 = vmatpush.bf16.msra.mxu0 %v298
        %325 = vmatmul.bf16.gmra.mxu0 %v291
        %v326 = vpop.f32.mrf.mxu0
        %v327 = vadd.f32 %v277, %v326
        %v328 = vpop.f32.mrf.mxu0
        %v329 = vadd.f32 %v282, %v328
        %330 = vdwg.mxu0
        %331 = vmatpush.bf16.msra.mxu0 0
        %332 = vmatpush.bf16.msra.mxu0 0
        %333 = vmatpush.bf16.msra.mxu0 0
        %334 = vmatpush.bf16.msra.mxu0 0
        %335 = vmatpush.bf16.msra.mxu0 0
        %336 = vmatpush.bf16.msra.mxu0 0
        %337 = vmatpush.bf16.msra.mxu0 0
        %338 = vmatpush.bf16.msra.mxu0 %v301
        %339 = vmatmul.bf16.gmra.mxu0 %v291
        %v340 = vpop.f32.mrf.mxu0
        %v341 = vadd.f32 %v277, %v340
        %v342 = vpop.f32.mrf.mxu0
        %v343 = vadd.f32 %v282, %v342
        %344 = vdwg.mxu0
        %v345 = vmul.f32 %v313, 0.70710677
        %v346 = vmul.f32 %v327, 0.70710677
        %v347 = vmul.f32 %v341, 0.70710677
        %v348 = vmul.f32 %v315, 0.70710677
        %v349 = vmul.f32 %v329, 0.70710677
        %v350 = vmul.f32 %v343, 0.70710677
        %v351 = vand.u32 2147483647, %v345
        %v352 = vand.u32 2147483647, %v346
        %v353 = vand.u32 2147483647, %v347
        %v354 = vand.u32 2147483647, %v348
        %v355 = vand.u32 2147483647, %v349
        %v356 = vand.u32 2147483647, %v350
        %v357 = vmul.f32 %v351, 0.3275911
        %v358 = vmul.f32 %v352, 0.3275911
        %v359 = vmul.f32 %v353, 0.3275911
        %v360 = vmul.f32 %v354, 0.3275911
        %v361 = vmul.f32 %v355, 0.3275911
        %v362 = vmul.f32 %v356, 0.3275911
        %v363 = vadd.f32 %v357, 1.0
        %v364 = vadd.f32 %v358, 1.0
        %v365 = vadd.f32 %v359, 1.0
        %v366 = vadd.f32 %v360, 1.0
        %v367 = vadd.f32 %v361, 1.0
        %v368 = vadd.f32 %v362, 1.0
        %v369 = vrcp.pop %v363
        %v370 = vrcp.pop %v364
        %v371 = vrcp.pop %v365
        %v372 = vrcp.pop %v366
        %v373 = vrcp.pop %v367
        %v374 = vrcp.pop %v368
        %v375 = vmul.f32 %v363, %v369
        %v376 = vmul.f32 %v364, %v370
        %v377 = vmul.f32 %v365, %v371
        %v378 = vmul.f32 %v366, %v372
        %v379 = vmul.f32 %v367, %v373
        %v380 = vmul.f32 %v368, %v374
        %v381 = vsub.f32 2.0, %v375
        %v382 = vsub.f32 2.0, %v376
        %v383 = vsub.f32 2.0, %v377
        %v384 = vsub.f32 2.0, %v378
        %v385 = vsub.f32 2.0, %v379
        %v386 = vsub.f32 2.0, %v380
        %v387 = vmul.f32 %v369, %v381
        %v388 = vmul.f32 %v370, %v382
        %v389 = vmul.f32 %v371, %v383
        %v390 = vmul.f32 %v372, %v384
        %v391 = vmul.f32 %v373, %v385
        %v392 = vmul.f32 %v374, %v386
        %v393 = vmul.f32 %v387, 1.0614054
        %v394 = vmul.f32 %v388, 1.0614054
        %v395 = vmul.f32 %v389, 1.0614054
        %v396 = vmul.f32 %v390, 1.0614054
        %v397 = vmul.f32 %v391, 1.0614054
        %v398 = vmul.f32 %v392, 1.0614054
        %v399 = vadd.f32 %v393, -1.4531521
        %v400 = vadd.f32 %v394, -1.4531521
        %v401 = vadd.f32 %v395, -1.4531521
        %v402 = vadd.f32 %v396, -1.4531521
        %v403 = vadd.f32 %v397, -1.4531521
        %v404 = vadd.f32 %v398, -1.4531521
        %v405 = vmul.f32 %v387, %v399
        %v406 = vmul.f32 %v388, %v400
        %v407 = vmul.f32 %v389, %v401
        %v408 = vmul.f32 %v390, %v402
        %v409 = vmul.f32 %v391, %v403
        %v410 = vmul.f32 %v392, %v404
        %v411 = vadd.f32 %v405, 1.4214138
        %v412 = vadd.f32 %v406, 1.4214138
        %v413 = vadd.f32 %v407, 1.4214138
        %v414 = vadd.f32 %v408, 1.4214138
        %v415 = vadd.f32 %v409, 1.4214138
        %v416 = vadd.f32 %v410, 1.4214138
        %v417 = vmul.f32 %v387, %v411
        %v418 = vmul.f32 %v388, %v412
        %v419 = vmul.f32 %v389, %v413
        %v420 = vmul.f32 %v390, %v414
        %v421 = vmul.f32 %v391, %v415
        %v422 = vmul.f32 %v392, %v416
        %v423 = vadd.f32 %v417, -0.28449672
        %v424 = vadd.f32 %v418, -0.28449672
        %v425 = vadd.f32 %v419, -0.28449672
        %v426 = vadd.f32 %v420, -0.28449672
        %v427 = vadd.f32 %v421, -0.28449672
        %v428 = vadd.f32 %v422, -0.28449672
        %v429 = vmul.f32 %v387, %v423
        %v430 = vmul.f32 %v388, %v424
        %v431 = vmul.f32 %v389, %v425
        %v432 = vmul.f32 %v390, %v426
        %v433 = vmul.f32 %v391, %v427
        %v434 = vmul.f32 %v392, %v428
        %v435 = vadd.f32 %v429, 0.2548296
        %v436 = vadd.f32 %v430, 0.2548296
        %v437 = vadd.f32 %v431, 0.2548296
        %v438 = vadd.f32 %v432, 0.2548296
        %v439 = vadd.f32 %v433, 0.2548296
        %v440 = vadd.f32 %v434, 0.2548296
        %v441 = vmul.f32 %v387, %v435
        %v442 = vmul.f32 %v388, %v436
        %v443 = vmul.f32 %v389, %v437
        %v444 = vmul.f32 %v390, %v438
        %v445 = vmul.f32 %v391, %v439
        %v446 = vmul.f32 %v392, %v440
        %v447 = vsub.f32 0.0, %v351
        %v448 = vsub.f32 0.0, %v352
        %v449 = vsub.f32 0.0, %v353
        %v450 = vsub.f32 0.0, %v354
        %v451 = vsub.f32 0.0, %v355
        %v452 = vsub.f32 0.0, %v356
        %v453 = vmul.f32 %v447, %v351
        %v454 = vmul.f32 %v448, %v352
        %v455 = vmul.f32 %v449, %v353
        %v456 = vmul.f32 %v450, %v354
        %v457 = vmul.f32 %v451, %v355
        %v458 = vmul.f32 %v452, %v356
        %v459 = vmul.f32 %v453, 1.442695
        %v460 = vpow.pop %v459
        %v461 = vmul.f32 %v454, 1.442695
        %v462 = vpow.pop %v461
        %v463 = vmul.f32 %v455, 1.442695
        %v464 = vpow.pop %v463
        %v465 = vmul.f32 %v456, 1.442695
        %v466 = vpow.pop %v465
        %v467 = vmul.f32 %v457, 1.442695
        %v468 = vpow.pop %v467
        %v469 = vmul.f32 %v458, 1.442695
        %v470 = vpow.pop %v469
        %v471 = vmul.f32 %v441, %v460
        %v472 = vmul.f32 %v442, %v462
        %v473 = vmul.f32 %v443, %v464
        %v474 = vmul.f32 %v444, %v466
        %v475 = vmul.f32 %v445, %v468
        %v476 = vmul.f32 %v446, %v470
        %v477 = vsub.f32 1.0, %v471
        %v478 = vsub.f32 1.0, %v472
        %v479 = vsub.f32 1.0, %v473
        %v480 = vsub.f32 1.0, %v474
        %v481 = vsub.f32 1.0, %v475
        %v482 = vsub.f32 1.0, %v476
        %vm483 = vcmp.ge.f32.partialorder %v345, 0.0
        %vm484 = vcmp.ge.f32.partialorder %v346, 0.0
        %vm485 = vcmp.ge.f32.partialorder %v347, 0.0
        %vm486 = vcmp.ge.f32.partialorder %v348, 0.0
        %vm487 = vcmp.ge.f32.partialorder %v349, 0.0
        %vm488 = vcmp.ge.f32.partialorder %v350, 0.0
        %v489 = vsub.f32 0.0, %v477
        %v490 = vsub.f32 0.0, %v478
        %v491 = vsub.f32 0.0, %v479
        %v492 = vsub.f32 0.0, %v480
        %v493 = vsub.f32 0.0, %v481
        %v494 = vsub.f32 0.0, %v482
        %v495 = vsel %vm483, %v477, %v489
        %v496 = vsel %vm484, %v478, %v490
        %v497 = vsel %vm485, %v479, %v491
        %v498 = vsel %vm486, %v480, %v492
        %v499 = vsel %vm487, %v481, %v493
        %v500 = vsel %vm488, %v482, %v494
        %v501 = vmul.f32 %v313, 0.5
        %v502 = vmul.f32 %v327, 0.5
        %v503 = vmul.f32 %v341, 0.5
        %v504 = vmul.f32 %v315, 0.5
        %v505 = vmul.f32 %v329, 0.5
        %v506 = vmul.f32 %v343, 0.5
        %v507 = vadd.f32 %v495, 1.0
        %v508 = vadd.f32 %v496, 1.0
        %v509 = vadd.f32 %v497, 1.0
        %v510 = vadd.f32 %v498, 1.0
        %v511 = vadd.f32 %v499, 1.0
        %v512 = vadd.f32 %v500, 1.0
        %v513 = vmul.f32 %v501, %v507
        %v514 = vmul.f32 %v502, %v508
        %v515 = vmul.f32 %v503, %v509
        %v516 = vmul.f32 %v504, %v510
        %v517 = vmul.f32 %v505, %v511
        %v518 = vmul.f32 %v506, %v512
        %v519 = vld [vmem:[%s3] sm:$0xf]
        %v520 = vpack.c.bf16 %v516, %v513
        %v521 = vpack.c.bf16 %v517, %v514
        %v522 = vpack.c.bf16 %v518, %v515
        %v523 = vld [vmem:[%s4] sm:$0xff]
        %525 = vset.pattern.permute.xlu0 0
        %526 = vperm.xlu0 %525, %v523
        %v527 = vpop.permute.xlu0 %526
        %vm529 = vcmask 130048
        %v531 = vsel %vm529, %v519, 0
        %533 = vmatpush.bf16.msra.mxu0 0
        %534 = vmatpush.bf16.msra.mxu0 0
        %535 = vmatpush.bf16.msra.mxu0 0
        %536 = vmatpush.bf16.msra.mxu0 0
        %537 = vmatpush.bf16.msra.mxu0 0
        %538 = vmatpush.bf16.msra.mxu0 0
        %539 = vmatpush.bf16.msra.mxu0 0
        %540 = vmatpush.bf16.msra.mxu0 %v520
        %541 = vmatmul.bf16.gmra.mxu0 %v531
        %v542 = vpop.f32.mrf.mxu0
        %v543 = vadd.f32 %v527, %v542
        %v544 = vpop.f32.mrf.mxu0
        %545 = vdwg.mxu0
        %546 = vmatpush.bf16.msra.mxu0 0
        %547 = vmatpush.bf16.msra.mxu0 0
        %548 = vmatpush.bf16.msra.mxu0 0
        %549 = vmatpush.bf16.msra.mxu0 0
        %550 = vmatpush.bf16.msra.mxu0 0
        %551 = vmatpush.bf16.msra.mxu0 0
        %552 = vmatpush.bf16.msra.mxu0 0
        %553 = vmatpush.bf16.msra.mxu0 %v521
        %554 = vmatmul.bf16.gmra.mxu0 %v531
        %v555 = vpop.f32.mrf.mxu0
        %v556 = vadd.f32 %v527, %v555
        %v557 = vpop.f32.mrf.mxu0
        %558 = vdwg.mxu0
        %559 = vmatpush.bf16.msra.mxu0 0
        %560 = vmatpush.bf16.msra.mxu0 0
        %561 = vmatpush.bf16.msra.mxu0 0
        %562 = vmatpush.bf16.msra.mxu0 0
        %563 = vmatpush.bf16.msra.mxu0 0
        %564 = vmatpush.bf16.msra.mxu0 0
        %565 = vmatpush.bf16.msra.mxu0 0
        %566 = vmatpush.bf16.msra.mxu0 %v522
        %567 = vmatmul.bf16.gmra.mxu0 %v531
        %v568 = vpop.f32.mrf.mxu0
        %v569 = vadd.f32 %v527, %v568
        %v570 = vpop.f32.mrf.mxu0
        %571 = vdwg.mxu0
        %572 = vst [vmem:[%s260] sm:$0xff] %v543
        %573 = vst [vmem:[%s260 + $0x8] sm:$0xff] %v556
        %574 = vst [vmem:[%s260 + $0x10] sm:$0xff] %v569
        %s575 = sand.u32 %s156, 1
        %s576 = scalar_lea.sflag [#allocation4], %s575
        %s577 = sand.u32 %s156, 1
        %s578 = smul.addr %s577, 24
        %s579 = scalar_lea.vmem [#allocation5], %s578
        // Predicated region
        $region45: #{tpu_custom_call.1} parent=39 // pred_check
          %p580 = pneg %p166
        $region46: #{tpu_custom_call.1} parent=39 // pred_check_branch
          %582 = sbr.rel (%p580) target = $region48
        $region47: #{tpu_custom_call.1} parent=39 // pred_region
          %s583 = smul.u32 3, %s27
          %585 = vsyncadd %s576, 0
          %s586 = smul.addr %s26, 3
          %s587 = sadd.s32 %s583, %s586
          %s588 = smul.addr %s587, 8
          %s589 = scalar_lea.hbm %s5, %s588
          %s591 = sshll.u32 %s579, 4
          %s592 = int_to_ptr.vmem [resolvable:$true] %s591
          %s593 = sshll.u32 %s589, 4
          %s594 = int_to_ptr.hbm [resolvable:$true] %s593
          %596 = dma.vmem_to_hbm [thread:$0]  %s592, 384, %s594, %s576
        $region48: #{tpu_custom_call.1} parent=39 // pred_fallthru
          _
      $region40: #{tpu_custom_call.1} parent=5 // pred_fallthru
        _
      %p597 = scmp.le.s32.totalorder 2, %s17
      // Predicated region
      $region49: #{tpu_custom_call.1} parent=5 // pred_check
        %p598 = pneg %p597
      $region50: #{tpu_custom_call.1} parent=5 // pred_check_branch
        %600 = sbr.rel (%p598) target = $region52
      $region51: #{tpu_custom_call.1} parent=5 // pred_region
        %s601 = ssub.s32 %s17, 2
        // Predicated region
        $region53: #{tpu_custom_call.1} parent=51 // pred_check
          %p602 = pneg %p172
        $region54: #{tpu_custom_call.1} parent=51 // pred_check_branch
          %604 = sbr.rel (%p602) target = $region56
        $region55: #{tpu_custom_call.1} parent=51 // pred_region
          %s605 = sand.u32 %s157, 1
          %s606 = scalar_lea.sflag [#allocation4], %s605
          %s607 = sand.u32 %s157, 1
          %s608 = smul.addr %s607, 24
          %s609 = scalar_lea.vmem [#allocation5], %s608
          %611 = dma.done %s606, 384
        $region56: #{tpu_custom_call.1} parent=51 // pred_fallthru
          _
      $region52: #{tpu_custom_call.1} parent=5 // pred_fallthru
        _
    $region6: #{tpu_custom_call.1} parent=1 // loop_footer
      %s21 = sadd.s32 1, %s17
    $region7: #{tpu_custom_call.1} parent=1 // loop_footer_branch
      %16 = sbr.rel target = $region3
    $region8: #{tpu_custom_call.1} parent=1 // loop_exit
      _
    %612 = vsyncpa [#allocation3], 1
    %s613 = scalar_lea.sflag [#allocation3], 1
    %614 = vsyncpa %s613, 1
    %615 = vsyncpa [#allocation4], 1
    %s616 = scalar_lea.sflag [#allocation4], 1
    %617 = vsyncpa %s616, 1

</llo_original>
